<compile_context>
chip_gen: v7x
topology: tpu7x:2x2x1
jax: 0.10.0
libtpu: 0.0.40
codegen_flags: <defaults>
</compile_context>

<pallas_src>
import functools
from typing import NamedTuple

import jax
import jax.numpy as jnp
from jax.experimental import pallas as pl
from jax.experimental.pallas import tpu as pltpu


def _round_up(x, m):
    return (x + m - 1) // m * m


def _cdiv(a, b):
    return -(-a // b)


def _sublane_multiple(dtype):
    # Sub-32-bit dtypes pack along sublanes: bf16 tiles are (16,128), i8/fp8 (32,128).
    return {4: 8, 2: 16, 1: 32}.get(jnp.dtype(dtype).itemsize, 8)


def _vmem_ceiling_bytes():
    """Per-generation VMEM ceiling, leaving ~25% headroom for internal scratch."""
    try:
        info = pltpu.get_tpu_info()
        cap = int(getattr(info, "vmem_capacity_bytes", 0) or 0)
        if cap > 0:
            return (cap * 3) // 4          # ~48 MiB on v7x, ~96 MiB on v5e/v6e
    except Exception:
        pass
    return 48 << 20                         # conservative fallback, safe on v7x


class LinearPlan(NamedTuple):
    tm: int
    tn: int
    tk: int
    Bp: int
    Kp: int
    Np: int
    vmem_limit: int


def make_linear_plan(batch, in_features, out_features,
                     act_dtype=jnp.float32, w_dtype=jnp.float32,
                     out_dtype=None, bias_dtype=None,
                     tm=512, tn=512, tk=1024):
    """One-time tiling / VMEM plan for y = t @ W^T + b."""
    out_dtype = act_dtype if out_dtype is None else out_dtype
    bias_dtype = w_dtype if bias_dtype is None else bias_dtype
    sub = _sublane_multiple(act_dtype)

    B8 = _round_up(batch, sub)
    K128 = _round_up(in_features, 128)
    N128 = _round_up(out_features, 128)

    # Clamp requested tiles to the (aligned) problem.
    tm = min(_round_up(tm, sub), B8)
    tn = min(_round_up(tn, 128), N128)
    tk = min(_round_up(tk, 128), K128)

    act_isz = jnp.dtype(act_dtype).itemsize
    w_isz = jnp.dtype(w_dtype).itemsize
    out_isz = jnp.dtype(out_dtype).itemsize
    b_isz = jnp.dtype(bias_dtype).itemsize

    def budget(tm_, tn_, tk_):
        # Double-buffered input/output tiles + worst-case f32 accumulator.
        return (2 * tm_ * tk_ * act_isz        # activation tile
                + 2 * tk_ * tn_ * w_isz        # weight tile
                + 2 * tn_ * b_isz              # bias row
                + 2 * tm_ * tn_ * out_isz      # output tile
                + tm_ * tn_ * 4)               # f32 accumulator (scratch)

    ceiling = _vmem_ceiling_bytes()
    slack = 2 << 20

    # Grow tiles toward the generation's VMEM ceiling (amortize the ~0.35us
    # per-grid-step overhead, lengthen contiguous weight DMAs).
    changed = True
    while changed:
        changed = False
        cand = min(_round_up(tk * 2, 128), K128)
        if cand > tk and budget(tm, tn, cand) + slack <= ceiling:
            tk, changed = cand, True
        cand = min(_round_up(tn * 2, 128), N128)
        if cand > tn and budget(tm, cand, tk) + slack <= ceiling:
            tn, changed = cand, True
        cand = min(_round_up(tm * 2, sub), B8)
        if cand > tm and budget(cand, tn, tk) + slack <= ceiling:
            tm, changed = cand, True

    # v7x has 2 TensorCores sharded over the "parallel" axes: if the batch axis
    # collapses to one block, keep >= 2 blocks along N so a core isn't idle.
    if _cdiv(B8, tm) < 2 and _cdiv(N128, tn) < 2 and N128 >= 256:
        tn = _round_up(_cdiv(N128, 2), 128)

    # Safety shrink if a caller over-asked (or on tiny-VMEM configs).
    while budget(tm, tn, tk) + slack > ceiling:
        if tk > 128:
            tk = max(128, _round_up(tk // 2, 128))
        elif tn > 128:
            tn = max(128, _round_up(tn // 2, 128))
        elif tm > sub:
            tm = max(sub, _round_up(tm // 2, sub))
        else:
            break

    Bp = _round_up(B8, tm)
    Kp = _round_up(K128, tk)
    Np = _round_up(N128, tn)
    vmem_limit = int(min(ceiling, max(budget(tm, tn, tk) + slack, 8 << 20)))
    return LinearPlan(tm, tn, tk, Bp, Kp, Np, vmem_limit)


def prepare_linear_params(weight, bias, plan):
    """One-time parameter prep (at load time, OUT of the per-call hot path).

    Pads the PyTorch (out_features, in_features) weight and transposes it to a
    lane-dense (Kp, Np) RHS so the kernel runs a plain MXU matmul with no
    per-tile transpose and no per-call weight rewrite in HBM. Zero padding is
    exact for a linear layer.
    """
    out_f, in_f = weight.shape
    w_prep = jnp.transpose(
        jnp.pad(weight, ((0, plan.Np - out_f), (0, plan.Kp - in_f))))
    b_prep = jnp.pad(bias, (0, plan.Np - out_f)).reshape(1, plan.Np)
    return w_prep, b_prep


def _linear_kernel_f32_out(t_ref, w_ref, b_ref, o_ref):
    """f32 output: accumulate directly into the resident output tile."""
    k = pl.program_id(2)

    @pl.when(k == 0)
    def _init():
        # Fold bias into the accumulator init (no epilogue add).
        o_ref[...] = jnp.broadcast_to(b_ref[...].astype(o_ref.dtype),
                                      o_ref.shape)

    o_ref[...] += jnp.dot(t_ref[...], w_ref[...],
                          preferred_element_type=jnp.float32)


def _linear_kernel_acc(t_ref, w_ref, b_ref, o_ref, acc_ref):
    """Non-f32 output: resident f32 VMEM accumulator, single cast at the end."""
    k = pl.program_id(2)

    @pl.when(k == 0)
    def _init():
        acc_ref[...] = jnp.broadcast_to(b_ref[...].astype(jnp.float32),
                                        acc_ref.shape)

    acc_ref[...] += jnp.dot(t_ref[...], w_ref[...],
                            preferred_element_type=jnp.float32)

    @pl.when(k == pl.num_programs(2) - 1)
    def _finalize():
        o_ref[...] = acc_ref[...].astype(o_ref.dtype)


@functools.partial(jax.jit, static_argnames=("out_features", "plan"))
def learnable_embedding_forward(t, w_prepared, b_prepared, *, out_features, plan):
    """Forward of LearnableEmbedding (nn.Linear): y = t @ weight.T + bias.

    t:          (B, in_features) activations (padded per call).
    w_prepared: (Kp, Np) pre-padded, pre-transposed weight (see prepare_linear_params).
    b_prepared: (1, Np)  pre-padded bias row.
    Returns (B, out_features) in t.dtype.
    """
    B, in_f = t.shape
    assert B <= plan.Bp and in_f <= plan.Kp, "plan was built for a smaller problem"

    # Only the activation is padded in the hot path (zero padding is exact).
    t_p = jnp.pad(t, ((0, plan.Bp - B), (0, plan.Kp - in_f)))

    out_dtype = t.dtype
    f32_out = jnp.dtype(out_dtype) == jnp.dtype(jnp.float32)
    kernel = _linear_kernel_f32_out if f32_out else _linear_kernel_acc
    scratch = [] if f32_out else [pltpu.VMEM((plan.tm, plan.tn), jnp.float32)]

    grid = (plan.Bp // plan.tm, plan.Np // plan.tn, plan.Kp // plan.tk)

    out_p = pl.pallas_call(
        kernel,
        out_shape=jax.ShapeDtypeStruct((plan.Bp, plan.Np), out_dtype),
        grid_spec=pltpu.PrefetchScalarGridSpec(
            num_scalar_prefetch=0,
            grid=grid,
            in_specs=[
                pl.BlockSpec((plan.tm, plan.tk), lambda i, j, k: (i, k)),  # act
                pl.BlockSpec((plan.tk, plan.tn), lambda i, j, k: (k, j)),  # weight (K,N)
                pl.BlockSpec((1, plan.tn), lambda i, j, k: (0, j)),        # bias
            ],
            out_specs=pl.BlockSpec((plan.tm, plan.tn), lambda i, j, k: (i, j)),
            scratch_shapes=scratch,
        ),
        compiler_params=pltpu.CompilerParams(
            dimension_semantics=("parallel", "parallel", "arbitrary"),
            vmem_limit_bytes=plan.vmem_limit,
        ),
    )(t_p, w_prepared, b_prepared)

    return out_p[:B, :out_features]


if __name__ == "__main__":
    # Module config (synthetic, deterministic init mimicking nn.Linear's
    # uniform(-1/sqrt(in_features), 1/sqrt(in_features)) init).
    in_features = 32
    out_features = 64
    batch = 8

    key = jax.random.PRNGKey(0)
    k_t, k_w, k_b = jax.random.split(key, 3)

    bound = 1.0 / float(jnp.sqrt(jnp.float32(in_features)))
    weight = jax.random.uniform(
        k_w, (out_features, in_features), jnp.float32, -bound, bound)
    bias = jax.random.uniform(
        k_b, (out_features,), jnp.float32, -bound, bound)
    t = jax.random.normal(k_t, (batch, in_features), jnp.float32)

    # One-time planning + parameter preparation (padding/transpose out of the
    # per-call forward hot path).
    plan = make_linear_plan(batch, in_features, out_features,
                            act_dtype=t.dtype, w_dtype=weight.dtype,
                            bias_dtype=bias.dtype)
    w_prep, b_prep = prepare_linear_params(weight, bias, plan)
    w_prep = jax.block_until_ready(w_prep)
    b_prep = jax.block_until_ready(b_prep)

    out = jax.block_until_ready(
        learnable_embedding_forward(
            t, w_prep, b_prep, out_features=out_features, plan=plan))

    # Reference check against plain JAX (same math as torch nn.Linear).
    ref = t @ weight.T + bias
    assert out.shape == (batch, out_features)
    assert jnp.allclose(out, ref, atol=1e-5, rtol=1e-5)

    print("KERNEL_OK")
</pallas_src>

<mosaic_0001>
module attributes {stable_mosaic.version = 11 : i64} {
  func.func @_linear_kernel_f32_out(%arg0: i32, %arg1: i32, %arg2: i32, %arg3: memref<8x128xf32, #tpu.memory_space<vmem>>, %arg4: memref<128x128xf32, #tpu.memory_space<vmem>>, %arg5: memref<1x128xf32, #tpu.memory_space<vmem>>, %arg6: memref<8x128xf32, #tpu.memory_space<vmem>>) attributes {dimension_semantics = [#tpu.dimension_semantics<parallel>, #tpu.dimension_semantics<parallel>, #tpu.dimension_semantics<arbitrary>], iteration_bounds = array<i64: 1, 1, 1>, scalar_prefetch = 0 : i64, scratch_operands = 0 : i64, tpu.core_type = #tpu.core_type<tc>, window_params = [{transform_indices = @transform_0, window_bounds = array<i64: 8, 128>}, {transform_indices = @transform_1, window_bounds = array<i64: 128, 128>}, {transform_indices = @transform_2, window_bounds = array<i64: 1, 128>}, {transform_indices = @transform_3, window_bounds = array<i64: 8, 128>}]} {
    %c0_i32 = arith.constant 0 : i32
    %0 = arith.cmpi eq, %arg2, %c0_i32 : i32
    %1 = arith.extui %0 : i1 to i32
    %c0_i32_0 = arith.constant 0 : i32
    %2 = arith.cmpi ne, %1, %c0_i32_0 : i32
    scf.if %2 {
      %c0_8 = arith.constant 0 : index
      %c0_9 = arith.constant 0 : index
      %9 = vector.load %arg5[%c0_8, %c0_9] : memref<1x128xf32, #tpu.memory_space<vmem>>, vector<1x128xf32>
      %10 = vector.shape_cast %9 : vector<1x128xf32> to vector<1x128xf32>
      %11 = vector.broadcast %10 : vector<1x128xf32> to vector<8x128xf32>
      %c0_10 = arith.constant 0 : index
      %c0_11 = arith.constant 0 : index
      %12 = vector.load %arg6[%c0_10, %c0_11] : memref<8x128xf32, #tpu.memory_space<vmem>>, vector<8x128xf32>
      tpu.vector_store %arg6[%c0_10, %c0_11], %11 {strides = array<i32>} : memref<8x128xf32, #tpu.memory_space<vmem>>, vector<8x128xf32>,
    } else {
    }
    %c0 = arith.constant 0 : index
    %c0_1 = arith.constant 0 : index
    %3 = vector.load %arg6[%c0, %c0_1] : memref<8x128xf32, #tpu.memory_space<vmem>>, vector<8x128xf32>
    %c0_2 = arith.constant 0 : index
    %c0_3 = arith.constant 0 : index
    %4 = vector.load %arg3[%c0_2, %c0_3] : memref<8x128xf32, #tpu.memory_space<vmem>>, vector<8x128xf32>
    %c0_4 = arith.constant 0 : index
    %c0_5 = arith.constant 0 : index
    %5 = vector.load %arg4[%c0_4, %c0_5] : memref<128x128xf32, #tpu.memory_space<vmem>>, vector<128x128xf32>
    %cst = arith.constant dense<0.000000e+00> : vector<8x128xf32>
    %6 = tpu.matmul %4, %5, %cst {dimension_numbers = #tpu.dot_dimension_numbers<[1], [0], [0], [1], [0, 0, 1, 1], [], []>} : vector<8x128xf32>, vector<128x128xf32>, vector<8x128xf32> -> vector<8x128xf32>
    %7 = arith.addf %3, %6 : vector<8x128xf32>
    %c0_6 = arith.constant 0 : index
    %c0_7 = arith.constant 0 : index
    %8 = vector.load %arg6[%c0_6, %c0_7] : memref<8x128xf32, #tpu.memory_space<vmem>>, vector<8x128xf32>
    tpu.vector_store %arg6[%c0_6, %c0_7], %7 {strides = array<i32>} : memref<8x128xf32, #tpu.memory_space<vmem>>, vector<8x128xf32>,
    return
  }
  func.func @transform_0(%arg0: i32, %arg1: i32, %arg2: i32) -> (i32, i32) {
    %c0_i32 = arith.constant 0 : i32
    return %arg0, %arg2 : i32, i32
  }
  func.func @transform_1(%arg0: i32, %arg1: i32, %arg2: i32) -> (i32, i32) {
    %c0_i32 = arith.constant 0 : i32
    return %arg2, %arg1 : i32, i32
  }
  func.func @transform_2(%arg0: i32, %arg1: i32, %arg2: i32) -> (i32, i32) {
    %c0_i32 = arith.constant 0 : i32
    %c0_i32_0 = arith.constant 0 : i32
    return %c0_i32, %arg1 : i32, i32
  }
  func.func @transform_3(%arg0: i32, %arg1: i32, %arg2: i32) -> (i32, i32) {
    %c0_i32 = arith.constant 0 : i32
    return %arg0, %arg1 : i32, i32
  }
}

</mosaic_0001>

<llo_original>
// kernel: learnable_embedding_forward.1
$region0: #{learnable_embedding_forward.1}
  #allocation0 [shape = 'u32[]', space=smem, size = 0x4, offset = 0x4, fixed_abs, tag = 'smem constant byte address 0x4 - core index']
  #allocation1 [shape = 'u32[144,128]{1,0:T(1,128)}', space=vmem, size = 0x12000, scoped, tag = 'internal scratch']
  %s0 = inlined_call_operand.vmem [shape: f32[8,128], index: 0, kind: input, shape index: {}]
  %s1 = inlined_call_operand.hbm [shape: f32[128,128], index: 1, kind: input, shape index: {}]
  %s2 = inlined_call_operand.vmem [shape: f32[1,128], index: 2, kind: input, shape index: {}]
  %s3 = inlined_call_operand.hbm [shape: f32[8,128], index: 3, kind: output, shape index: {}]
  %s4 = sld [smem:[#allocation0]]
  $region30: #{learnable_embedding_forward.1} parent=0
    _
  %s6 = ssub.s32 1, %s4
  %s7 = scalar_select 0, %s6, %s4
  $region1: #{learnable_embedding_forward.1} parent=0
    #allocation2 [shape = 'u8[65536]{0}', space=vmem, size = 0x10000, scoped, tag = 'input window, operand 1, single buffered']
    #allocation3 [shape = 's32[1]{0}', space=sflag, size = 0x4, scoped, tag = 'scoped memory for learnable_embedding_forward.1']
    #allocation4 [shape = 's32[1]{0}', space=sflag, size = 0x4, scoped, tag = 'scoped memory for learnable_embedding_forward.1']
    #allocation5 [shape = 'u8[4096]{0}', space=vmem, size = 0x1000, scoped, tag = 'output window, operand 0, single buffered']
    %8 = vsyncpa [#allocation3], 0
    %9 = vsyncpa [#allocation4], 0
    // Predicated region
    $region2: #{learnable_embedding_forward.1} parent=1 // pred_check
      _
    $region3: #{learnable_embedding_forward.1} parent=1 // pred_check_branch
      %11 = sbr.rel (0) target = $region5
    $region4: #{learnable_embedding_forward.1} parent=1 // pred_region
      _
    $region5: #{learnable_embedding_forward.1} parent=1 // pred_fallthru
      _
    // Predicated region
    $region6: #{learnable_embedding_forward.1} parent=1 // pred_check
      _
    $region7: #{learnable_embedding_forward.1} parent=1 // pred_check_branch
      %13 = sbr.rel (0) target = $region9
    $region8: #{learnable_embedding_forward.1} parent=1 // pred_region
      %s15 = ssub.s32 2048, 2048
      %16 = vsyncadd [#allocation3], %s15
      %s17 = sshll.u32 [#allocation2], 4
      %s18 = int_to_ptr.vmem [resolvable:$true] %s17
      %23 = dma.hbm_to_vmem [thread:$0]  %s1, 2048, %s18, [#allocation3], 128, 128, 8
    $region9: #{learnable_embedding_forward.1} parent=1 // pred_fallthru
      _
    // Predicated region
    $region10: #{learnable_embedding_forward.1} parent=1 // pred_check
      _
    $region11: #{learnable_embedding_forward.1} parent=1 // pred_check_branch
      %25 = sbr.rel (0) target = $region13
    $region12: #{learnable_embedding_forward.1} parent=1 // pred_region
      _
    $region13: #{learnable_embedding_forward.1} parent=1 // pred_fallthru
      _
    // Predicated region
    $region14: #{learnable_embedding_forward.1} parent=1 // pred_check
      _
    $region15: #{learnable_embedding_forward.1} parent=1 // pred_check_branch
      %27 = sbr.rel (0) target = $region17
    $region16: #{learnable_embedding_forward.1} parent=1 // pred_region
      %28 = dma.done [#allocation3], 2048
    $region17: #{learnable_embedding_forward.1} parent=1 // pred_fallthru
      _
    %p29 = scmp.eq.s32.totalorder 0, 0
    // Predicated region
    $region18: #{learnable_embedding_forward.1} parent=1 // pred_check
      %p30 = pneg %p29
    $region19: #{learnable_embedding_forward.1} parent=1 // pred_check_branch
      %32 = sbr.rel (%p30) target = $region21
    $region20: #{learnable_embedding_forward.1} parent=1 // pred_region
      %v33 = vld [vmem:[%s2] sm:$0x1]
      %v35 = vlaneseq
      %v36 = vshrl.u32 %v35, 7
      %v37 = vsub.s32 0, %v36
      %v38 = vrot.slane %v33, %v37
      %40 = vst [vmem:[#allocation5] sm:$0xff] %v38
    $region21: #{learnable_embedding_forward.1} parent=1 // pred_fallthru
      _
    %v41 = vld [vmem:[#allocation5] sm:$0xff]
    %v42 = vld [vmem:[%s0] sm:$0xff]
    %v43 = vld [vmem:[#allocation2] sm:$0xff]
    %v44 = vld [vmem:[#allocation2 + $0x8] sm:$0xff]
    %v45 = vld [vmem:[#allocation2 + $0x10] sm:$0xff]
    %v46 = vld [vmem:[#allocation2 + $0x18] sm:$0xff]
    %v47 = vld [vmem:[#allocation2 + $0x20] sm:$0xff]
    %v48 = vld [vmem:[#allocation2 + $0x28] sm:$0xff]
    %v49 = vld [vmem:[#allocation2 + $0x30] sm:$0xff]
    %v50 = vld [vmem:[#allocation2 + $0x38] sm:$0xff]
    %v51 = vld [vmem:[#allocation2 + $0x40] sm:$0xff]
    %v52 = vld [vmem:[#allocation2 + $0x48] sm:$0xff]
    %v53 = vld [vmem:[#allocation2 + $0x50] sm:$0xff]
    %v54 = vld [vmem:[#allocation2 + $0x58] sm:$0xff]
    %v55 = vld [vmem:[#allocation2 + $0x60] sm:$0xff]
    %v56 = vld [vmem:[#allocation2 + $0x68] sm:$0xff]
    %v57 = vld [vmem:[#allocation2 + $0x70] sm:$0xff]
    %v58 = vld [vmem:[#allocation2 + $0x78] sm:$0xff]
    %59 = vmatprep.subr.mxu0 0.0
    %60 = vmatpush1.msra.mxu0 %v43
    %61 = vmatprep.subr.mxu0 0.0
    %62 = vmatpush1.msra.mxu0 %v44
    %63 = vmatprep.subr.mxu0 0.0
    %64 = vmatpush1.msra.mxu0 %v45
    %65 = vmatprep.subr.mxu0 0.0
    %66 = vmatpush1.msra.mxu0 %v46
    %67 = vmatprep.subr.mxu0 0.0
    %68 = vmatpush1.msra.mxu0 %v47
    %69 = vmatprep.subr.mxu0 0.0
    %70 = vmatpush1.msra.mxu0 %v48
    %71 = vmatprep.subr.mxu0 0.0
    %72 = vmatpush1.msra.mxu0 %v49
    %73 = vmatprep.subr.mxu0 0.0
    %74 = vmatpush1.msra.mxu0 %v50
    %75 = vmatprep.subr.mxu0 0.0
    %76 = vmatpush1.msra.mxu0 %v51
    %77 = vmatprep.subr.mxu0 0.0
    %78 = vmatpush1.msra.mxu0 %v52
    %79 = vmatprep.subr.mxu0 0.0
    %80 = vmatpush1.msra.mxu0 %v53
    %81 = vmatprep.subr.mxu0 0.0
    %82 = vmatpush1.msra.mxu0 %v54
    %83 = vmatprep.subr.mxu0 0.0
    %84 = vmatpush1.msra.mxu0 %v55
    %85 = vmatprep.subr.mxu0 0.0
    %86 = vmatpush1.msra.mxu0 %v56
    %87 = vmatprep.subr.mxu0 0.0
    %88 = vmatpush1.msra.mxu0 %v57
    %89 = vmatprep.subr.mxu0 0.0
    %90 = vmatpush1.msra.mxu0 %v58
    %91 = vmatprep.subr.mxu0 0.0
    %92 = vmatpush1.msra.mxu0 0.0
    %93 = vmatprep.subr.mxu0 0.0
    %94 = vmatpush1.msra.mxu0 0.0
    %95 = vmatprep.subr.mxu0 0.0
    %96 = vmatpush1.msra.mxu0 0.0
    %97 = vmatprep.subr.mxu0 0.0
    %98 = vmatpush1.msra.mxu0 0.0
    %99 = vmatprep.subr.mxu0 0.0
    %100 = vmatpush1.msra.mxu0 0.0
    %101 = vmatprep.subr.mxu0 0.0
    %102 = vmatpush1.msra.mxu0 0.0
    %103 = vmatprep.subr.mxu0 0.0
    %104 = vmatpush1.msra.mxu0 0.0
    %105 = vmatprep.subr.mxu0 0.0
    %106 = vmatpush1.msra.mxu0 0.0
    %107 = vmatprep.subr.mxu0 0.0
    %108 = vmatpush1.msra.mxu0 0.0
    %109 = vmatprep.subr.mxu0 0.0
    %110 = vmatpush1.msra.mxu0 0.0
    %111 = vmatprep.subr.mxu0 0.0
    %112 = vmatpush1.msra.mxu0 0.0
    %113 = vmatprep.subr.mxu0 0.0
    %114 = vmatpush1.msra.mxu0 0.0
    %115 = vmatprep.subr.mxu0 0.0
    %116 = vmatpush1.msra.mxu0 0.0
    %117 = vmatprep.subr.mxu0 0.0
    %118 = vmatpush1.msra.mxu0 0.0
    %119 = vmatprep.subr.mxu0 0.0
    %120 = vmatpush1.msra.mxu0 0.0
    %121 = vmatprep.subr.mxu0 0.0
    %122 = vmatpush1.msra.mxu0 0.0
    %123 = vmatprep.mubr.f32.mxu0 0.0
    %124 = vmatmul.mubr.f32.gmra.mrb[0].mxu0 %v42
    %v125 = vpop.f32.mrb[0].mxu0
    %v126 = vadd.f32 0.0, %v125
    %v127 = vpop.f32.mrb[0].mxu0
    %128 = vdwg.mxu0
    %v129 = vadd.f32 %v41, %v126
    %130 = vst [vmem:[#allocation5] sm:$0xff] %v129
    // Predicated region
    $region22: #{learnable_embedding_forward.1} parent=1 // pred_check
      _
    $region23: #{learnable_embedding_forward.1} parent=1 // pred_check_branch
      %132 = sbr.rel (0) target = $region25
    $region24: #{learnable_embedding_forward.1} parent=1 // pred_region
      %s134 = ssub.s32 128, 128
      %135 = vsyncadd [#allocation4], %s134
      %s137 = sshll.u32 [#allocation5], 4
      %s138 = int_to_ptr.vmem [resolvable:$true] %s137
      %140 = dma.vmem_to_hbm [thread:$0]  %s138, 128, %s3, [#allocation4]
    $region25: #{learnable_embedding_forward.1} parent=1 // pred_fallthru
      _
    // Predicated region
    $region26: #{learnable_embedding_forward.1} parent=1 // pred_check
      _
    $region27: #{learnable_embedding_forward.1} parent=1 // pred_check_branch
      %142 = sbr.rel (0) target = $region29
    $region28: #{learnable_embedding_forward.1} parent=1 // pred_region
      %143 = dma.done [#allocation4], 128
    $region29: #{learnable_embedding_forward.1} parent=1 // pred_fallthru
      _
    %144 = vsyncpa [#allocation3], 1
    %145 = vsyncpa [#allocation4], 1

</llo_original>
